<compile_context>
chip_gen: v5e
topology: v5e:2x2
jax: 0.10.0
libtpu: 0.0.40
codegen_flags: <defaults>
</compile_context>

<pallas_src>
import jax
import jax.numpy as jnp
from jax import lax
from jax.experimental import pallas as pl
from jax.experimental.pallas import tpu as pltpu

NEG_INF = -1e30
LANE = 128


# ---------------------------------------------------------------------------
# Fused Pallas kernel: 4 GAT layers + pooling + doc branch + final fc
# ---------------------------------------------------------------------------
def _gnn_kernel(adj_ref, x_ref, pool_ref, doc_ref,
                w1_ref, as1_ref, b1_ref,
                w2_ref, as2_ref, b2_ref,
                docw_ref, docb_ref, fcw1_ref, fcw2_ref, fcb_ref,
                out_ref):
    h_dim = as1_ref.shape[1]

    # Additive attention mask: 0 where edge j->i exists, -1e30 elsewhere.
    # Computed ONCE from the int8 adjacency (pure arithmetic, no compare/select)
    # and reused by all four GAT layers.
    bias_mask = (adj_ref[...].astype(jnp.float32) - 1.0) * 1e30         # (N, N)

    def gat(h, wbig, att_src, bias):
        """Single-head GATConv (PyG semantics: heads=1, concat=True, slope=0.2).

        wbig = [W | W @ att_dst^T]: one MXU pass yields both the projected
        features xp and the destination attention logits a_dst.
        """
        big = jnp.dot(h, wbig, preferred_element_type=jnp.float32)      # (N, H+1)
        xp = big[:, :h_dim]                                             # (N, H)
        a_dst = big[:, h_dim:h_dim + 1]                                 # (N, 1)
        # a_src needs to live on the lane axis as a (1, N) row for the broadcast.
        a_src = lax.dot_general(att_src, xp, (((1,), (1,)), ((), ())),
                                preferred_element_type=jnp.float32)     # (1, N)

        # scores[i, j] = a_dst[i] + a_src[j]   (edge j -> i)
        s = a_dst + a_src                                               # (N, N)
        s = jnp.maximum(s, 0.2 * s)                                     # LeakyReLU(0.2)
        s = s + bias_mask                                               # additive mask

        # masked softmax over source nodes j (axis=1); masked entries underflow to 0
        m = jnp.max(s, axis=1, keepdims=True)
        e = jnp.exp(s - m)
        denom = jnp.sum(e, axis=1, keepdims=True)
        attn = e * pl.reciprocal(denom, approx=True)                    # EUP reciprocal

        return jnp.dot(attn, xp, preferred_element_type=jnp.float32) + bias

    # conv1 + ReLU
    h = gat(x_ref[...], w1_ref[...], as1_ref[...], b1_ref[...])
    h = jnp.maximum(h, 0.0)

    # conv2 applied three times with the same weights, no activation in between
    w2, as2, b2 = w2_ref[...], as2_ref[...], b2_ref[...]
    h = lax.fori_loop(0, 3, lambda _, hh: gat(hh, w2, as2, b2), h, unroll=True)

    # head: global_mean_pool + doc_fc(+ReLU) + concat folded into a split matmul
    pooled = jnp.dot(pool_ref[...], h, preferred_element_type=jnp.float32)   # (G, H)
    doc_emb = jnp.dot(doc_ref[...], docw_ref[...],
                      preferred_element_type=jnp.float32) + docb_ref[...]
    doc_emb = jnp.maximum(doc_emb, 0.0)                                      # (G, H)
    out_ref[...] = (jnp.dot(pooled, fcw1_ref[...], preferred_element_type=jnp.float32)
                    + jnp.dot(doc_emb, fcw2_ref[...], preferred_element_type=jnp.float32)
                    + fcb_ref[...])                                          # (G, O_pad)


_VMEM = pl.BlockSpec(memory_space=pltpu.MemorySpace.VMEM)


def gnn_forward(params, x, adj_i8, pool, doc_features):
    n, f = x.shape
    g = pool.shape[0]
    h_dim = params["w1"].shape[1]
    doc_dim = doc_features.shape[1]
    o = params["fc_b"].shape[1]
    o_pad = ((o + LANE - 1) // LANE) * LANE

    # Fold the destination-attention projection into the feature matmul.
    w1big = jnp.concatenate([params["w1"], params["w1"] @ params["att_dst1"].T], axis=1)
    w2big = jnp.concatenate([params["w2"], params["w2"] @ params["att_dst2"].T], axis=1)

    # Split + lane-pad the final fc so the kernel's output store is lane-dense.
    pad = o_pad - o
    fc_w1 = jnp.pad(params["fc_w"][:h_dim], ((0, 0), (0, pad)))
    fc_w2 = jnp.pad(params["fc_w"][h_dim:], ((0, 0), (0, pad)))
    fc_b = jnp.pad(params["fc_b"], ((0, 0), (0, pad)))

    cost = pl.CostEstimate(
        flops=int(4 * (2 * n * n * h_dim)              # attn @ xp, 4 layers
                  + 2 * n * f * (h_dim + 1)            # conv1 projection
                  + 3 * 2 * n * h_dim * (h_dim + 1)    # conv2 projections
                  + 4 * 2 * n * h_dim                  # a_src rows
                  + 2 * g * n * h_dim                  # pooling
                  + 2 * g * doc_dim * h_dim            # doc fc
                  + 2 * 2 * g * h_dim * o_pad),        # final fc
        transcendentals=int(4 * n * n + 4 * n),        # exp + reciprocal
        bytes_accessed=int(n * n                       # int8 adjacency (dominant)
                           + 4 * (x.size + pool.size + doc_features.size
                                  + w1big.size + w2big.size + params["doc_w"].size
                                  + fc_w1.size + fc_w2.size
                                  + 6 * h_dim + o_pad + g * o_pad)),
    )

    out = pl.pallas_call(
        _gnn_kernel,
        out_shape=jax.ShapeDtypeStruct((g, o_pad), jnp.float32),
        in_specs=[_VMEM] * 15,
        out_specs=_VMEM,
        # Explicit VMEM budget (<= v7x's 64 MiB physical; far above actual usage here).
        compiler_params=pltpu.CompilerParams(vmem_limit_bytes=64 * 1024 * 1024),
        cost_estimate=cost,
    )(adj_i8, x, pool, doc_features,
      w1big, params["att_src1"], params["b1"],
      w2big, params["att_src2"], params["b2"],
      params["doc_w"], params["doc_b"], fc_w1, fc_w2, fc_b)
    return out[:, :o]
    # TODO(synk): for N beyond VMEM residency (~2.5-3K on v5e/v6e's 128 MiB, ~1.7-2K on
    # v7x's 64 MiB), switch to a flash-style grid over (dst-row, src-col) adj tiles with
    # online softmax: dst-row axis leading with dimension_semantics=("parallel", ...,
    # "arbitrary") to shard across v7x's 2 TensorCores, BlockSpec Buffered(2) adj tiles
    # (~2x smaller area on v7x than the v6e choice), and a scalar-prefetched per-tile
    # nonzero count to pl.when-skip fully-masked tiles.  For lane utilization at small
    # N/H, pack multiple graphs block-diagonally so N is a multiple of 128.


# ---------------------------------------------------------------------------
# Parameter / input construction
# ---------------------------------------------------------------------------
def init_params(key, input_dim, hidden_dim, output_dim, doc_dim):
    ks = jax.random.split(key, 11)
    s = 0.1
    return {
        "w1":       s * jax.random.normal(ks[0],  (input_dim, hidden_dim), jnp.float32),
        "att_src1": s * jax.random.normal(ks[1],  (1, hidden_dim), jnp.float32),
        "att_dst1": s * jax.random.normal(ks[2],  (1, hidden_dim), jnp.float32),
        "b1":       s * jax.random.normal(ks[3],  (1, hidden_dim), jnp.float32),
        "w2":       s * jax.random.normal(ks[4],  (hidden_dim, hidden_dim), jnp.float32),
        "att_src2": s * jax.random.normal(ks[5],  (1, hidden_dim), jnp.float32),
        "att_dst2": s * jax.random.normal(ks[6],  (1, hidden_dim), jnp.float32),
        "b2":       s * jax.random.normal(ks[7],  (1, hidden_dim), jnp.float32),
        "doc_w":    s * jax.random.normal(ks[8],  (doc_dim, hidden_dim), jnp.float32),
        "doc_b":    s * jax.random.normal(ks[9],  (1, hidden_dim), jnp.float32),
        "fc_w":     s * jax.random.normal(ks[10], (2 * hidden_dim, output_dim), jnp.float32),
        "fc_b":     jnp.zeros((1, output_dim), jnp.float32),
    }


def build_adjacency(edge_index, num_nodes):
    """int8 adj[i, j] = 1 iff edge j -> i, plus self-loops (GATConv add_self_loops)."""
    src, dst = edge_index
    adj = jnp.zeros((num_nodes, num_nodes), jnp.int8)
    adj = adj.at[dst, src].set(1)
    adj = adj.at[jnp.arange(num_nodes), jnp.arange(num_nodes)].set(1)
    return adj


def build_pool_matrix(batch, num_graphs):
    """pool[g, n] = 1/count_g iff batch[n] == g  (global_mean_pool)."""
    onehot = (batch[None, :] == jnp.arange(num_graphs)[:, None]).astype(jnp.float32)
    counts = jnp.sum(onehot, axis=1, keepdims=True)
    return onehot / jnp.maximum(counts, 1.0)


# ---------------------------------------------------------------------------
if __name__ == "__main__":
    INPUT_DIM, HIDDEN_DIM, OUTPUT_DIM, DOC_DIM = 8, 32, 4, 12
    N_NODES, N_GRAPHS, N_EDGES = 16, 2, 40

    key = jax.random.PRNGKey(0)
    k_param, k_x, k_doc, k_src, k_dst = jax.random.split(key, 5)

    params = init_params(k_param, INPUT_DIM, HIDDEN_DIM, OUTPUT_DIM, DOC_DIM)

    x = jax.random.normal(k_x, (N_NODES, INPUT_DIM), jnp.float32)
    doc_features = jax.random.normal(k_doc, (N_GRAPHS, DOC_DIM), jnp.float32)

    # random edge_index (2, E); nodes 0..7 -> graph 0, 8..15 -> graph 1
    src = jax.random.randint(k_src, (N_EDGES,), 0, N_NODES)
    dst = jax.random.randint(k_dst, (N_EDGES,), 0, N_NODES)
    edge_index = jnp.stack([src, dst], axis=0)
    batch = jnp.concatenate([jnp.zeros(8, jnp.int32), jnp.ones(8, jnp.int32)])

    adj = build_adjacency(edge_index, N_NODES)        # int8
    pool = build_pool_matrix(batch, N_GRAPHS)         # f32

    out = jax.jit(gnn_forward)(params, x, adj, pool, doc_features)
    out = jax.block_until_ready(out)
    assert out.shape == (N_GRAPHS, OUTPUT_DIM)
    print("KERNEL_OK")
</pallas_src>

<mosaic_0001>
module attributes {stable_mosaic.version = 11 : i64} {
  func.func @_gnn_kernel(%arg0: memref<16x16xi8, #tpu.memory_space<vmem>>, %arg1: memref<16x8xf32, #tpu.memory_space<vmem>>, %arg2: memref<2x16xf32, #tpu.memory_space<vmem>>, %arg3: memref<2x12xf32, #tpu.memory_space<vmem>>, %arg4: memref<8x33xf32, #tpu.memory_space<vmem>>, %arg5: memref<1x32xf32, #tpu.memory_space<vmem>>, %arg6: memref<1x32xf32, #tpu.memory_space<vmem>>, %arg7: memref<32x33xf32, #tpu.memory_space<vmem>>, %arg8: memref<1x32xf32, #tpu.memory_space<vmem>>, %arg9: memref<1x32xf32, #tpu.memory_space<vmem>>, %arg10: memref<12x32xf32, #tpu.memory_space<vmem>>, %arg11: memref<1x32xf32, #tpu.memory_space<vmem>>, %arg12: memref<32x128xf32, #tpu.memory_space<vmem>>, %arg13: memref<32x128xf32, #tpu.memory_space<vmem>>, %arg14: memref<1x128xf32, #tpu.memory_space<vmem>>, %arg15: memref<2x128xf32, #tpu.memory_space<vmem>>) attributes {dimension_semantics = [], scalar_prefetch = 0 : i64, scratch_operands = 0 : i64, tpu.core_type = #tpu.core_type<tc>} {
    %c0 = arith.constant 0 : index
    %c0_0 = arith.constant 0 : index
    %0 = vector.load %arg0[%c0, %c0_0] : memref<16x16xi8, #tpu.memory_space<vmem>>, vector<16x16xi8>
    %1 = arith.sitofp %0 : vector<16x16xi8> to vector<16x16xf32>
    %cst = arith.constant 1.000000e+00 : f32
    %2 = vector.broadcast %cst : f32 to vector<16x16xf32>
    %3 = arith.subf %1, %2 : vector<16x16xf32>
    %cst_1 = arith.constant 1.000000e+30 : f32
    %4 = vector.broadcast %cst_1 : f32 to vector<16x16xf32>
    %5 = arith.mulf %3, %4 : vector<16x16xf32>
    %c0_2 = arith.constant 0 : index
    %c0_3 = arith.constant 0 : index
    %6 = vector.load %arg1[%c0_2, %c0_3] : memref<16x8xf32, #tpu.memory_space<vmem>>, vector<16x8xf32>
    %c0_4 = arith.constant 0 : index
    %c0_5 = arith.constant 0 : index
    %7 = vector.load %arg4[%c0_4, %c0_5] : memref<8x33xf32, #tpu.memory_space<vmem>>, vector<8x33xf32>
    %c0_6 = arith.constant 0 : index
    %c0_7 = arith.constant 0 : index
    %8 = vector.load %arg5[%c0_6, %c0_7] : memref<1x32xf32, #tpu.memory_space<vmem>>, vector<1x32xf32>
    %c0_8 = arith.constant 0 : index
    %c0_9 = arith.constant 0 : index
    %9 = vector.load %arg6[%c0_8, %c0_9] : memref<1x32xf32, #tpu.memory_space<vmem>>, vector<1x32xf32>
    %cst_10 = arith.constant dense<0.000000e+00> : vector<16x33xf32>
    %10 = tpu.matmul %6, %7, %cst_10 {dimension_numbers = #tpu.dot_dimension_numbers<[1], [0], [0], [1], [0, 0, 1, 1], [], []>} : vector<16x8xf32>, vector<8x33xf32>, vector<16x33xf32> -> vector<16x33xf32>
    %11 = vector.extract_strided_slice %10 {offsets = [0, 0], sizes = [16, 32], strides = [1, 1]} : vector<16x33xf32> to vector<16x32xf32>
    %12 = vector.extract_strided_slice %10 {offsets = [0, 32], sizes = [16, 1], strides = [1, 1]} : vector<16x33xf32> to vector<16x1xf32>
    %cst_11 = arith.constant dense<0.000000e+00> : vector<1x16xf32>
    %13 = tpu.matmul %8, %11, %cst_11 {dimension_numbers = #tpu.dot_dimension_numbers<[1], [1], [0], [0], [0, 0, 1, 0], [], []>} : vector<1x32xf32>, vector<16x32xf32>, vector<1x16xf32> -> vector<1x16xf32>
    %14 = vector.broadcast %12 : vector<16x1xf32> to vector<16x16xf32>
    %15 = vector.broadcast %13 : vector<1x16xf32> to vector<16x16xf32>
    %16 = arith.addf %14, %15 : vector<16x16xf32>
    %cst_12 = arith.constant 2.000000e-01 : f32
    %17 = vector.broadcast %cst_12 : f32 to vector<16x16xf32>
    %18 = arith.mulf %17, %16 : vector<16x16xf32>
    %19 = arith.maximumf %16, %18 : vector<16x16xf32>
    %20 = arith.addf %19, %5 : vector<16x16xf32>
    %cst_13 = arith.constant dense<0xFF800000> : vector<16xf32>
    %21 = vector.multi_reduction <maximumf>, %20, %cst_13 [1] : vector<16x16xf32> to vector<16xf32>
    %22 = vector.shape_cast %21 : vector<16xf32> to vector<16x1xf32>
    %23 = vector.broadcast %22 : vector<16x1xf32> to vector<16x16xf32>
    %24 = arith.subf %20, %23 : vector<16x16xf32>
    %25 = math.exp %24 : vector<16x16xf32>
    %cst_14 = arith.constant dense<0.000000e+00> : vector<16xf32>
    %26 = vector.multi_reduction <add>, %25, %cst_14 [1] : vector<16x16xf32> to vector<16xf32>
    %27 = vector.shape_cast %26 : vector<16xf32> to vector<16x1xf32>
    %28 = tpu.reciprocal %27 {approx = true} : vector<16x1xf32> -> vector<16x1xf32>
    %29 = vector.broadcast %28 : vector<16x1xf32> to vector<16x16xf32>
    %30 = arith.mulf %25, %29 : vector<16x16xf32>
    %cst_15 = arith.constant dense<0.000000e+00> : vector<16x32xf32>
    %31 = tpu.matmul %30, %11, %cst_15 {dimension_numbers = #tpu.dot_dimension_numbers<[1], [0], [0], [1], [0, 0, 1, 1], [], []>} : vector<16x16xf32>, vector<16x32xf32>, vector<16x32xf32> -> vector<16x32xf32>
    %32 = vector.broadcast %9 : vector<1x32xf32> to vector<16x32xf32>
    %33 = arith.addf %31, %32 : vector<16x32xf32>
    %cst_16 = arith.constant 0.000000e+00 : f32
    %34 = vector.broadcast %cst_16 : f32 to vector<16x32xf32>
    %35 = arith.maximumf %33, %34 : vector<16x32xf32>
    %c0_17 = arith.constant 0 : index
    %c0_18 = arith.constant 0 : index
    %36 = vector.load %arg7[%c0_17, %c0_18] : memref<32x33xf32, #tpu.memory_space<vmem>>, vector<32x33xf32>
    %c0_19 = arith.constant 0 : index
    %c0_20 = arith.constant 0 : index
    %37 = vector.load %arg8[%c0_19, %c0_20] : memref<1x32xf32, #tpu.memory_space<vmem>>, vector<1x32xf32>
    %c0_21 = arith.constant 0 : index
    %c0_22 = arith.constant 0 : index
    %38 = vector.load %arg9[%c0_21, %c0_22] : memref<1x32xf32, #tpu.memory_space<vmem>>, vector<1x32xf32>
    %c0_i32 = arith.constant 0 : i32
    %cst_23 = arith.constant dense<0.000000e+00> : vector<16x33xf32>
    %39 = tpu.matmul %35, %36, %cst_23 {dimension_numbers = #tpu.dot_dimension_numbers<[1], [0], [0], [1], [0, 0, 1, 1], [], []>} : vector<16x32xf32>, vector<32x33xf32>, vector<16x33xf32> -> vector<16x33xf32>
    %40 = vector.extract_strided_slice %39 {offsets = [0, 0], sizes = [16, 32], strides = [1, 1]} : vector<16x33xf32> to vector<16x32xf32>
    %41 = vector.extract_strided_slice %39 {offsets = [0, 32], sizes = [16, 1], strides = [1, 1]} : vector<16x33xf32> to vector<16x1xf32>
    %cst_24 = arith.constant dense<0.000000e+00> : vector<1x16xf32>
    %42 = tpu.matmul %37, %40, %cst_24 {dimension_numbers = #tpu.dot_dimension_numbers<[1], [1], [0], [0], [0, 0, 1, 0], [], []>} : vector<1x32xf32>, vector<16x32xf32>, vector<1x16xf32> -> vector<1x16xf32>
    %43 = vector.broadcast %41 : vector<16x1xf32> to vector<16x16xf32>
    %44 = vector.broadcast %42 : vector<1x16xf32> to vector<16x16xf32>
    %45 = arith.addf %43, %44 : vector<16x16xf32>
    %cst_25 = arith.constant 2.000000e-01 : f32
    %46 = vector.broadcast %cst_25 : f32 to vector<16x16xf32>
    %47 = arith.mulf %46, %45 : vector<16x16xf32>
    %48 = arith.maximumf %45, %47 : vector<16x16xf32>
    %49 = arith.addf %48, %5 : vector<16x16xf32>
    %cst_26 = arith.constant dense<0xFF800000> : vector<16xf32>
    %50 = vector.multi_reduction <maximumf>, %49, %cst_26 [1] : vector<16x16xf32> to vector<16xf32>
    %51 = vector.shape_cast %50 : vector<16xf32> to vector<16x1xf32>
    %52 = vector.broadcast %51 : vector<16x1xf32> to vector<16x16xf32>
    %53 = arith.subf %49, %52 : vector<16x16xf32>
    %54 = math.exp %53 : vector<16x16xf32>
    %cst_27 = arith.constant dense<0.000000e+00> : vector<16xf32>
    %55 = vector.multi_reduction <add>, %54, %cst_27 [1] : vector<16x16xf32> to vector<16xf32>
    %56 = vector.shape_cast %55 : vector<16xf32> to vector<16x1xf32>
    %57 = tpu.reciprocal %56 {approx = true} : vector<16x1xf32> -> vector<16x1xf32>
    %58 = vector.broadcast %57 : vector<16x1xf32> to vector<16x16xf32>
    %59 = arith.mulf %54, %58 : vector<16x16xf32>
    %cst_28 = arith.constant dense<0.000000e+00> : vector<16x32xf32>
    %60 = tpu.matmul %59, %40, %cst_28 {dimension_numbers = #tpu.dot_dimension_numbers<[1], [0], [0], [1], [0, 0, 1, 1], [], []>} : vector<16x16xf32>, vector<16x32xf32>, vector<16x32xf32> -> vector<16x32xf32>
    %61 = vector.broadcast %38 : vector<1x32xf32> to vector<16x32xf32>
    %62 = arith.addf %60, %61 : vector<16x32xf32>
    %c1_i32 = arith.constant 1 : i32
    %cst_29 = arith.constant dense<0.000000e+00> : vector<16x33xf32>
    %63 = tpu.matmul %62, %36, %cst_29 {dimension_numbers = #tpu.dot_dimension_numbers<[1], [0], [0], [1], [0, 0, 1, 1], [], []>} : vector<16x32xf32>, vector<32x33xf32>, vector<16x33xf32> -> vector<16x33xf32>
    %64 = vector.extract_strided_slice %63 {offsets = [0, 0], sizes = [16, 32], strides = [1, 1]} : vector<16x33xf32> to vector<16x32xf32>
    %65 = vector.extract_strided_slice %63 {offsets = [0, 32], sizes = [16, 1], strides = [1, 1]} : vector<16x33xf32> to vector<16x1xf32>
    %cst_30 = arith.constant dense<0.000000e+00> : vector<1x16xf32>
    %66 = tpu.matmul %37, %64, %cst_30 {dimension_numbers = #tpu.dot_dimension_numbers<[1], [1], [0], [0], [0, 0, 1, 0], [], []>} : vector<1x32xf32>, vector<16x32xf32>, vector<1x16xf32> -> vector<1x16xf32>
    %67 = vector.broadcast %65 : vector<16x1xf32> to vector<16x16xf32>
    %68 = vector.broadcast %66 : vector<1x16xf32> to vector<16x16xf32>
    %69 = arith.addf %67, %68 : vector<16x16xf32>
    %cst_31 = arith.constant 2.000000e-01 : f32
    %70 = vector.broadcast %cst_31 : f32 to vector<16x16xf32>
    %71 = arith.mulf %70, %69 : vector<16x16xf32>
    %72 = arith.maximumf %69, %71 : vector<16x16xf32>
    %73 = arith.addf %72, %5 : vector<16x16xf32>
    %cst_32 = arith.constant dense<0xFF800000> : vector<16xf32>
    %74 = vector.multi_reduction <maximumf>, %73, %cst_32 [1] : vector<16x16xf32> to vector<16xf32>
    %75 = vector.shape_cast %74 : vector<16xf32> to vector<16x1xf32>
    %76 = vector.broadcast %75 : vector<16x1xf32> to vector<16x16xf32>
    %77 = arith.subf %73, %76 : vector<16x16xf32>
    %78 = math.exp %77 : vector<16x16xf32>
    %cst_33 = arith.constant dense<0.000000e+00> : vector<16xf32>
    %79 = vector.multi_reduction <add>, %78, %cst_33 [1] : vector<16x16xf32> to vector<16xf32>
    %80 = vector.shape_cast %79 : vector<16xf32> to vector<16x1xf32>
    %81 = tpu.reciprocal %80 {approx = true} : vector<16x1xf32> -> vector<16x1xf32>
    %82 = vector.broadcast %81 : vector<16x1xf32> to vector<16x16xf32>
    %83 = arith.mulf %78, %82 : vector<16x16xf32>
    %cst_34 = arith.constant dense<0.000000e+00> : vector<16x32xf32>
    %84 = tpu.matmul %83, %64, %cst_34 {dimension_numbers = #tpu.dot_dimension_numbers<[1], [0], [0], [1], [0, 0, 1, 1], [], []>} : vector<16x16xf32>, vector<16x32xf32>, vector<16x32xf32> -> vector<16x32xf32>
    %85 = vector.broadcast %38 : vector<1x32xf32> to vector<16x32xf32>
    %86 = arith.addf %84, %85 : vector<16x32xf32>
    %c2_i32 = arith.constant 2 : i32
    %cst_35 = arith.constant dense<0.000000e+00> : vector<16x33xf32>
    %87 = tpu.matmul %86, %36, %cst_35 {dimension_numbers = #tpu.dot_dimension_numbers<[1], [0], [0], [1], [0, 0, 1, 1], [], []>} : vector<16x32xf32>, vector<32x33xf32>, vector<16x33xf32> -> vector<16x33xf32>
    %88 = vector.extract_strided_slice %87 {offsets = [0, 0], sizes = [16, 32], strides = [1, 1]} : vector<16x33xf32> to vector<16x32xf32>
    %89 = vector.extract_strided_slice %87 {offsets = [0, 32], sizes = [16, 1], strides = [1, 1]} : vector<16x33xf32> to vector<16x1xf32>
    %cst_36 = arith.constant dense<0.000000e+00> : vector<1x16xf32>
    %90 = tpu.matmul %37, %88, %cst_36 {dimension_numbers = #tpu.dot_dimension_numbers<[1], [1], [0], [0], [0, 0, 1, 0], [], []>} : vector<1x32xf32>, vector<16x32xf32>, vector<1x16xf32> -> vector<1x16xf32>
    %91 = vector.broadcast %89 : vector<16x1xf32> to vector<16x16xf32>
    %92 = vector.broadcast %90 : vector<1x16xf32> to vector<16x16xf32>
    %93 = arith.addf %91, %92 : vector<16x16xf32>
    %cst_37 = arith.constant 2.000000e-01 : f32
    %94 = vector.broadcast %cst_37 : f32 to vector<16x16xf32>
    %95 = arith.mulf %94, %93 : vector<16x16xf32>
    %96 = arith.maximumf %93, %95 : vector<16x16xf32>
    %97 = arith.addf %96, %5 : vector<16x16xf32>
    %cst_38 = arith.constant dense<0xFF800000> : vector<16xf32>
    %98 = vector.multi_reduction <maximumf>, %97, %cst_38 [1] : vector<16x16xf32> to vector<16xf32>
    %99 = vector.shape_cast %98 : vector<16xf32> to vector<16x1xf32>
    %100 = vector.broadcast %99 : vector<16x1xf32> to vector<16x16xf32>
    %101 = arith.subf %97, %100 : vector<16x16xf32>
    %102 = math.exp %101 : vector<16x16xf32>
    %cst_39 = arith.constant dense<0.000000e+00> : vector<16xf32>
    %103 = vector.multi_reduction <add>, %102, %cst_39 [1] : vector<16x16xf32> to vector<16xf32>
    %104 = vector.shape_cast %103 : vector<16xf32> to vector<16x1xf32>
    %105 = tpu.reciprocal %104 {approx = true} : vector<16x1xf32> -> vector<16x1xf32>
    %106 = vector.broadcast %105 : vector<16x1xf32> to vector<16x16xf32>
    %107 = arith.mulf %102, %106 : vector<16x16xf32>
    %cst_40 = arith.constant dense<0.000000e+00> : vector<16x32xf32>
    %108 = tpu.matmul %107, %88, %cst_40 {dimension_numbers = #tpu.dot_dimension_numbers<[1], [0], [0], [1], [0, 0, 1, 1], [], []>} : vector<16x16xf32>, vector<16x32xf32>, vector<16x32xf32> -> vector<16x32xf32>
    %109 = vector.broadcast %38 : vector<1x32xf32> to vector<16x32xf32>
    %110 = arith.addf %108, %109 : vector<16x32xf32>
    %c0_41 = arith.constant 0 : index
    %c0_42 = arith.constant 0 : index
    %111 = vector.load %arg2[%c0_41, %c0_42] : memref<2x16xf32, #tpu.memory_space<vmem>>, vector<2x16xf32>
    %cst_43 = arith.constant dense<0.000000e+00> : vector<2x32xf32>
    %112 = tpu.matmul %111, %110, %cst_43 {dimension_numbers = #tpu.dot_dimension_numbers<[1], [0], [0], [1], [0, 0, 1, 1], [], []>} : vector<2x16xf32>, vector<16x32xf32>, vector<2x32xf32> -> vector<2x32xf32>
    %c0_44 = arith.constant 0 : index
    %c0_45 = arith.constant 0 : index
    %113 = vector.load %arg3[%c0_44, %c0_45] : memref<2x12xf32, #tpu.memory_space<vmem>>, vector<2x12xf32>
    %c0_46 = arith.constant 0 : index
    %c0_47 = arith.constant 0 : index
    %114 = vector.load %arg10[%c0_46, %c0_47] : memref<12x32xf32, #tpu.memory_space<vmem>>, vector<12x32xf32>
    %cst_48 = arith.constant dense<0.000000e+00> : vector<2x32xf32>
    %115 = tpu.matmul %113, %114, %cst_48 {dimension_numbers = #tpu.dot_dimension_numbers<[1], [0], [0], [1], [0, 0, 1, 1], [], []>} : vector<2x12xf32>, vector<12x32xf32>, vector<2x32xf32> -> vector<2x32xf32>
    %c0_49 = arith.constant 0 : index
    %c0_50 = arith.constant 0 : index
    %116 = vector.load %arg11[%c0_49, %c0_50] : memref<1x32xf32, #tpu.memory_space<vmem>>, vector<1x32xf32>
    %117 = vector.broadcast %116 : vector<1x32xf32> to vector<2x32xf32>
    %118 = arith.addf %115, %117 : vector<2x32xf32>
    %cst_51 = arith.constant 0.000000e+00 : f32
    %119 = vector.broadcast %cst_51 : f32 to vector<2x32xf32>
    %120 = arith.maximumf %118, %119 : vector<2x32xf32>
    %c0_52 = arith.constant 0 : index
    %c0_53 = arith.constant 0 : index
    %121 = vector.load %arg12[%c0_52, %c0_53] : memref<32x128xf32, #tpu.memory_space<vmem>>, vector<32x128xf32>
    %cst_54 = arith.constant dense<0.000000e+00> : vector<2x128xf32>
    %122 = tpu.matmul %112, %121, %cst_54 {dimension_numbers = #tpu.dot_dimension_numbers<[1], [0], [0], [1], [0, 0, 1, 1], [], []>} : vector<2x32xf32>, vector<32x128xf32>, vector<2x128xf32> -> vector<2x128xf32>
    %c0_55 = arith.constant 0 : index
    %c0_56 = arith.constant 0 : index
    %123 = vector.load %arg13[%c0_55, %c0_56] : memref<32x128xf32, #tpu.memory_space<vmem>>, vector<32x128xf32>
    %cst_57 = arith.constant dense<0.000000e+00> : vector<2x128xf32>
    %124 = tpu.matmul %120, %123, %cst_57 {dimension_numbers = #tpu.dot_dimension_numbers<[1], [0], [0], [1], [0, 0, 1, 1], [], []>} : vector<2x32xf32>, vector<32x128xf32>, vector<2x128xf32> -> vector<2x128xf32>
    %125 = arith.addf %122, %124 : vector<2x128xf32>
    %c0_58 = arith.constant 0 : index
    %c0_59 = arith.constant 0 : index
    %126 = vector.load %arg14[%c0_58, %c0_59] : memref<1x128xf32, #tpu.memory_space<vmem>>, vector<1x128xf32>
    %127 = vector.broadcast %126 : vector<1x128xf32> to vector<2x128xf32>
    %128 = arith.addf %125, %127 : vector<2x128xf32>
    %c0_60 = arith.constant 0 : index
    %c0_61 = arith.constant 0 : index
    %129 = vector.load %arg15[%c0_60, %c0_61] : memref<2x128xf32, #tpu.memory_space<vmem>>, vector<2x128xf32>
    tpu.vector_store %arg15[%c0_60, %c0_61], %128 {strides = array<i32>} : memref<2x128xf32, #tpu.memory_space<vmem>>, vector<2x128xf32>,
    return
  }
}

</mosaic_0001>

<llo_original>
// kernel: gnn_forward.1
$region0: #{gnn_forward.1}
  #allocation0 [shape = 'u32[]', space=smem, size = 0x4, offset = 0x4, fixed_abs, tag = 'smem constant byte address 0x4 - core index']
  #allocation1 [shape = 'u32[72,128]{1,0:T(1,128)}', space=vmem, size = 0x9000, scoped, tag = 'internal scratch']
  %s0 = inlined_call_operand.vmem [shape: s8[16,16], index: 0, kind: input, shape index: {}]
  %s1 = inlined_call_operand.vmem [shape: f32[16,8], index: 1, kind: input, shape index: {}]
  %s2 = inlined_call_operand.vmem [shape: f32[2,16], index: 2, kind: input, shape index: {}]
  %s3 = inlined_call_operand.vmem [shape: f32[2,12], index: 3, kind: input, shape index: {}]
  %s4 = inlined_call_operand.vmem [shape: f32[8,33], index: 4, kind: input, shape index: {}]
  %s5 = inlined_call_operand.vmem [shape: f32[1,32], index: 5, kind: input, shape index: {}]
  %s6 = inlined_call_operand.vmem [shape: f32[1,32], index: 6, kind: input, shape index: {}]
  %s7 = inlined_call_operand.vmem [shape: f32[32,33], index: 7, kind: input, shape index: {}]
  %s8 = inlined_call_operand.vmem [shape: f32[1,32], index: 8, kind: input, shape index: {}]
  %s9 = inlined_call_operand.vmem [shape: f32[1,32], index: 9, kind: input, shape index: {}]
  %s10 = inlined_call_operand.vmem [shape: f32[12,32], index: 10, kind: input, shape index: {}]
  %s11 = inlined_call_operand.vmem [shape: f32[1,32], index: 11, kind: input, shape index: {}]
  %s12 = inlined_call_operand.vmem [shape: f32[32,128], index: 12, kind: input, shape index: {}]
  %s13 = inlined_call_operand.vmem [shape: f32[32,128], index: 13, kind: input, shape index: {}]
  %s14 = inlined_call_operand.vmem [shape: f32[1,128], index: 14, kind: input, shape index: {}]
  %s15 = inlined_call_operand.hbm [shape: f32[2,128], index: 15, kind: output, shape index: {}]
  %s16 = sld [smem:[#allocation0]]
  $region70: #{gnn_forward.1} parent=0
    _
  %s18 = ssub.s32 1, %s16
  %s19 = scalar_select 0, %s18, %s16
  $region1: #{gnn_forward.1} parent=0
    #allocation2 [shape = 'u8[1024]{0}', space=vmem, size = 0x400, scoped, tag = 'output window, operand 0, single buffered']
    #allocation3 [shape = 's32[1]{0}', space=sflag, size = 0x4, scoped, tag = 'scoped memory for gnn_forward.1']
    %20 = vsyncpa [#allocation3], 0
    // Predicated region
    $region2: #{gnn_forward.1} parent=1 // pred_check
      _
    $region3: #{gnn_forward.1} parent=1 // pred_check_branch
      %22 = sbr.rel (0) target = $region5
    $region4: #{gnn_forward.1} parent=1 // pred_region
      _
    $region5: #{gnn_forward.1} parent=1 // pred_fallthru
      _
    // Predicated region
    $region6: #{gnn_forward.1} parent=1 // pred_check
      _
    $region7: #{gnn_forward.1} parent=1 // pred_check_branch
      %24 = sbr.rel (0) target = $region9
    $region8: #{gnn_forward.1} parent=1 // pred_region
      _
    $region9: #{gnn_forward.1} parent=1 // pred_fallthru
      _
    // Predicated region
    $region10: #{gnn_forward.1} parent=1 // pred_check
      _
    $region11: #{gnn_forward.1} parent=1 // pred_check_branch
      %26 = sbr.rel (0) target = $region13
    $region12: #{gnn_forward.1} parent=1 // pred_region
      _
    $region13: #{gnn_forward.1} parent=1 // pred_fallthru
      _
    // Predicated region
    $region14: #{gnn_forward.1} parent=1 // pred_check
      _
    $region15: #{gnn_forward.1} parent=1 // pred_check_branch
      %28 = sbr.rel (0) target = $region17
    $region16: #{gnn_forward.1} parent=1 // pred_region
      _
    $region17: #{gnn_forward.1} parent=1 // pred_fallthru
      _
    // Predicated region
    $region18: #{gnn_forward.1} parent=1 // pred_check
      _
    $region19: #{gnn_forward.1} parent=1 // pred_check_branch
      %30 = sbr.rel (0) target = $region21
    $region20: #{gnn_forward.1} parent=1 // pred_region
      _
    $region21: #{gnn_forward.1} parent=1 // pred_fallthru
      _
    // Predicated region
    $region22: #{gnn_forward.1} parent=1 // pred_check
      _
    $region23: #{gnn_forward.1} parent=1 // pred_check_branch
      %32 = sbr.rel (0) target = $region25
    $region24: #{gnn_forward.1} parent=1 // pred_region
      _
    $region25: #{gnn_forward.1} parent=1 // pred_fallthru
      _
    // Predicated region
    $region26: #{gnn_forward.1} parent=1 // pred_check
      _
    $region27: #{gnn_forward.1} parent=1 // pred_check_branch
      %34 = sbr.rel (0) target = $region29
    $region28: #{gnn_forward.1} parent=1 // pred_region
      _
    $region29: #{gnn_forward.1} parent=1 // pred_fallthru
      _
    // Predicated region
    $region30: #{gnn_forward.1} parent=1 // pred_check
      _
    $region31: #{gnn_forward.1} parent=1 // pred_check_branch
      %36 = sbr.rel (0) target = $region33
    $region32: #{gnn_forward.1} parent=1 // pred_region
      _
    $region33: #{gnn_forward.1} parent=1 // pred_fallthru
      _
    // Predicated region
    $region34: #{gnn_forward.1} parent=1 // pred_check
      _
    $region35: #{gnn_forward.1} parent=1 // pred_check_branch
      %38 = sbr.rel (0) target = $region37
    $region36: #{gnn_forward.1} parent=1 // pred_region
      _
    $region37: #{gnn_forward.1} parent=1 // pred_fallthru
      _
    // Predicated region
    $region38: #{gnn_forward.1} parent=1 // pred_check
      _
    $region39: #{gnn_forward.1} parent=1 // pred_check_branch
      %40 = sbr.rel (0) target = $region41
    $region40: #{gnn_forward.1} parent=1 // pred_region
      _
    $region41: #{gnn_forward.1} parent=1 // pred_fallthru
      _
    // Predicated region
    $region42: #{gnn_forward.1} parent=1 // pred_check
      _
    $region43: #{gnn_forward.1} parent=1 // pred_check_branch
      %42 = sbr.rel (0) target = $region45
    $region44: #{gnn_forward.1} parent=1 // pred_region
      _
    $region45: #{gnn_forward.1} parent=1 // pred_fallthru
      _
    // Predicated region
    $region46: #{gnn_forward.1} parent=1 // pred_check
      _
    $region47: #{gnn_forward.1} parent=1 // pred_check_branch
      %44 = sbr.rel (0) target = $region49
    $region48: #{gnn_forward.1} parent=1 // pred_region
      _
    $region49: #{gnn_forward.1} parent=1 // pred_fallthru
      _
    // Predicated region
    $region50: #{gnn_forward.1} parent=1 // pred_check
      _
    $region51: #{gnn_forward.1} parent=1 // pred_check_branch
      %46 = sbr.rel (0) target = $region53
    $region52: #{gnn_forward.1} parent=1 // pred_region
      _
    $region53: #{gnn_forward.1} parent=1 // pred_fallthru
      _
    // Predicated region
    $region54: #{gnn_forward.1} parent=1 // pred_check
      _
    $region55: #{gnn_forward.1} parent=1 // pred_check_branch
      %48 = sbr.rel (0) target = $region57
    $region56: #{gnn_forward.1} parent=1 // pred_region
      _
    $region57: #{gnn_forward.1} parent=1 // pred_fallthru
      _
    // Predicated region
    $region58: #{gnn_forward.1} parent=1 // pred_check
      _
    $region59: #{gnn_forward.1} parent=1 // pred_check_branch
      %50 = sbr.rel (0) target = $region61
    $region60: #{gnn_forward.1} parent=1 // pred_region
      _
    $region61: #{gnn_forward.1} parent=1 // pred_fallthru
      _
    %v51 = vld [vmem:[%s0] sm:$0x3]
    %v52 = vld [vmem:[%s0 + $0x2] sm:$0x3]
    %v53 = vunpack.c.0.s8 %v51
    %v54 = vunpack.c.0.s8 %v52
    %v55 = vcvt.s32.f32 %v53
    %v56 = vcvt.s32.f32 %v54
    %v57 = vsub.f32 %v55, 1.0
    %v58 = vsub.f32 %v56, 1.0
    %v59 = vmul.f32 %v57, 1e+30
    %v60 = vmul.f32 %v58, 1e+30
    %v61 = vld [vmem:[%s1] sm:$0xff]
    %v62 = vld [vmem:[%s1 + $0x8] sm:$0xff]
    %v63 = vld [vmem:[%s4] sm:$0xff]
    %v64 = vld [vmem:[%s5] sm:$0x1]
    %v65 = vld [vmem:[%s6] sm:$0x1]
    %vm66 = vcmask 64512
    %v68 = vsel %vm66, %v61, 0
    %v71 = vsel %vm66, %v62, 0
    %73 = vmatpush.msra.mxu0 0.0
    %74 = vmatpush.msra.mxu0 0.0
    %75 = vmatpush.msra.mxu0 0.0
    %76 = vmatpush.msra.mxu0 0.0
    %77 = vmatpush.msra.mxu0 0.0
    %78 = vmatpush.msra.mxu0 0.0
    %79 = vmatpush.msra.mxu0 0.0
    %80 = vmatpush.msra.mxu0 0.0
    %81 = vmatpush.msra.mxu0 0.0
    %82 = vmatpush.msra.mxu0 0.0
    %83 = vmatpush.msra.mxu0 0.0
    %84 = vmatpush.msra.mxu0 0.0
    %85 = vmatpush.msra.mxu0 0.0
    %86 = vmatpush.msra.mxu0 0.0
    %87 = vmatpush.msra.mxu0 0.0
    %88 = vmatpush.msra.mxu0 %v63
    %89 = vmatmul.f32.gmra.mxu0 %v68
    %v90 = vpop.f32.mrf.mxu0
    %v91 = vadd.f32 0.0, %v90
    %92 = vmatmul.f32.gmra.mxu0 %v71
    %v93 = vpop.f32.mrf.mxu0
    %v94 = vadd.f32 0.0, %v93
    %95 = vdwg.mxu0
    %vm96 = vcmask 261120
    %v98 = vsel %vm96, %v64, 0
    %v101 = vsel %vm96, %v91, 0
    %v104 = vsel %vm96, %v94, 0
    %106 = vmatpush.xpose.msra.mxu0 0.0
    %107 = vmatpush.xpose.msra.mxu0 0.0
    %108 = vmatpush.xpose.msra.mxu0 0.0
    %109 = vmatpush.xpose.msra.mxu0 0.0
    %110 = vmatpush.xpose.msra.mxu0 0.0
    %111 = vmatpush.xpose.msra.mxu0 0.0
    %112 = vmatpush.xpose.msra.mxu0 0.0
    %113 = vmatpush.xpose.msra.mxu0 0.0
    %114 = vmatpush.xpose.msra.mxu0 0.0
    %115 = vmatpush.xpose.msra.mxu0 0.0
    %116 = vmatpush.xpose.msra.mxu0 0.0
    %117 = vmatpush.xpose.msra.mxu0 0.0
    %118 = vmatpush.xpose.msra.mxu0 0.0
    %119 = vmatpush.xpose.msra.mxu0 0.0
    %120 = vmatpush.xpose.msra.mxu0 %v104
    %121 = vmatpush.xpose.msra.mxu0 %v101
    %122 = vmatmul.f32.gmra.mxu0 %v98
    %v123 = vpop.f32.mrf.mxu0
    %v124 = vadd.f32 0.0, %v123
    %125 = vdwg.mxu0
    %126 = vset.pattern.permute.xlu0 32
    %127 = vperm.xlu0 %126, %v91
    %v128 = vpop.permute.xlu0 %127
    %130 = vset.pattern.permute.xlu0 32
    %131 = vperm.xlu0 %130, %v94
    %v132 = vpop.permute.xlu0 %131
    %v134 = vperm.slane %v124, 0
    %v135 = vadd.f32 %v128, %v134
    %v136 = vadd.f32 %v132, %v134
    %v137 = vmul.f32 %v135, 0.2
    %v138 = vmul.f32 %v136, 0.2
    %v139 = vmax.f32 %v135, %v137
    %v140 = vmax.f32 %v136, %v138
    %v141 = vadd.f32 %v139, %v59
    %v142 = vadd.f32 %v140, %v60
    %vm143 = vcmask 130048
    %v144 = vsel %vm143, %v141, -inf
    %145 = vmax.xlane.f32.xlu0 %v144
    %v146 = vpop.xlane.xlu0 %145
    %v147 = vsel %vm143, %v142, -inf
    %148 = vmax.xlane.f32.xlu0 %v147
    %v149 = vpop.xlane.xlu0 %148
    %v150 = vsub.f32 %v141, %v146
    %v151 = vsub.f32 %v142, %v149
    %v152 = vmul.f32 %v150, 1.442695
    %v153 = vpow.pop %v152
    %v154 = vmul.f32 %v151, 1.442695
    %v155 = vpow.pop %v154
    %v156 = vsel %vm143, %v153, 0.0
    %157 = vadd.xlane.f32.xlu0 %v156
    %v158 = vpop.xlane.xlu0 %157
    %v159 = vsel %vm143, %v155, 0.0
    %160 = vadd.xlane.f32.xlu0 %v159
    %v161 = vpop.xlane.xlu0 %160
    %v162 = vrcp.pop %v158
    %v163 = vrcp.pop %v161
    %v164 = vmul.f32 %v153, %v162
    %v165 = vmul.f32 %v155, %v163
    %v167 = vperm.slane %v65, 0
    %v170 = vsel %vm143, %v164, 0
    %v173 = vsel %vm143, %v165, 0
    %175 = vmatpush.msra.mxu0 0.0
    %176 = vmatpush.msra.mxu0 0.0
    %177 = vmatpush.msra.mxu0 0.0
    %178 = vmatpush.msra.mxu0 0.0
    %179 = vmatpush.msra.mxu0 0.0
    %180 = vmatpush.msra.mxu0 0.0
    %181 = vmatpush.msra.mxu0 0.0
    %182 = vmatpush.msra.mxu0 0.0
    %183 = vmatpush.msra.mxu0 0.0
    %184 = vmatpush.msra.mxu0 0.0
    %185 = vmatpush.msra.mxu0 0.0
    %186 = vmatpush.msra.mxu0 0.0
    %187 = vmatpush.msra.mxu0 0.0
    %188 = vmatpush.msra.mxu0 0.0
    %189 = vmatpush.msra.mxu0 %v94
    %190 = vmatpush.msra.mxu0 %v91
    %191 = vmatmul.f32.gmra.mxu0 %v170
    %v192 = vpop.f32.mrf.mxu0
    %v193 = vadd.f32 %v167, %v192
    %194 = vmatmul.f32.gmra.mxu0 %v173
    %v195 = vpop.f32.mrf.mxu0
    %v196 = vadd.f32 %v167, %v195
    %197 = vdwg.mxu0
    %v198 = vmax.f32 %v193, 0.0
    %v199 = vmax.f32 %v196, 0.0
    %v200 = vld [vmem:[%s7] sm:$0xff]
    %v201 = vld [vmem:[%s7 + $0x8] sm:$0xff]
    %v202 = vld [vmem:[%s7 + $0x10] sm:$0xff]
    %v203 = vld [vmem:[%s7 + $0x18] sm:$0xff]
    %v204 = vld [vmem:[%s8] sm:$0x1]
    %v205 = vld [vmem:[%s9] sm:$0x1]
    %v207 = vsel %vm96, %v198, 0
    %v210 = vsel %vm96, %v199, 0
    %212 = vmatpush.msra.mxu0 0.0
    %213 = vmatpush.msra.mxu0 0.0
    %214 = vmatpush.msra.mxu0 0.0
    %215 = vmatpush.msra.mxu0 0.0
    %216 = vmatpush.msra.mxu0 0.0
    %217 = vmatpush.msra.mxu0 0.0
    %218 = vmatpush.msra.mxu0 0.0
    %219 = vmatpush.msra.mxu0 0.0
    %220 = vmatpush.msra.mxu0 0.0
    %221 = vmatpush.msra.mxu0 0.0
    %222 = vmatpush.msra.mxu0 0.0
    %223 = vmatpush.msra.mxu0 0.0
    %224 = vmatpush.msra.mxu0 %v203
    %225 = vmatpush.msra.mxu0 %v202
    %226 = vmatpush.msra.mxu0 %v201
    %227 = vmatpush.msra.mxu0 %v200
    %228 = vmatmul.f32.gmra.mxu0 %v207
    %v229 = vpop.f32.mrf.mxu0
    %v230 = vadd.f32 0.0, %v229
    %231 = vmatmul.f32.gmra.mxu0 %v210
    %v232 = vpop.f32.mrf.mxu0
    %v233 = vadd.f32 0.0, %v232
    %234 = vdwg.mxu0
    %v236 = vsel %vm96, %v204, 0
    %v239 = vsel %vm96, %v230, 0
    %v242 = vsel %vm96, %v233, 0
    %244 = vmatpush.xpose.msra.mxu0 0.0
    %245 = vmatpush.xpose.msra.mxu0 0.0
    %246 = vmatpush.xpose.msra.mxu0 0.0
    %247 = vmatpush.xpose.msra.mxu0 0.0
    %248 = vmatpush.xpose.msra.mxu0 0.0
    %249 = vmatpush.xpose.msra.mxu0 0.0
    %250 = vmatpush.xpose.msra.mxu0 0.0
    %251 = vmatpush.xpose.msra.mxu0 0.0
    %252 = vmatpush.xpose.msra.mxu0 0.0
    %253 = vmatpush.xpose.msra.mxu0 0.0
    %254 = vmatpush.xpose.msra.mxu0 0.0
    %255 = vmatpush.xpose.msra.mxu0 0.0
    %256 = vmatpush.xpose.msra.mxu0 0.0
    %257 = vmatpush.xpose.msra.mxu0 0.0
    %258 = vmatpush.xpose.msra.mxu0 %v242
    %259 = vmatpush.xpose.msra.mxu0 %v239
    %260 = vmatmul.f32.gmra.mxu0 %v236
    %v261 = vpop.f32.mrf.mxu0
    %v262 = vadd.f32 0.0, %v261
    %263 = vdwg.mxu0
    %264 = vset.pattern.permute.xlu0 32
    %265 = vperm.xlu0 %264, %v230
    %v266 = vpop.permute.xlu0 %265
    %268 = vset.pattern.permute.xlu0 32
    %269 = vperm.xlu0 %268, %v233
    %v270 = vpop.permute.xlu0 %269
    %v272 = vperm.slane %v262, 0
    %v273 = vadd.f32 %v266, %v272
    %v274 = vadd.f32 %v270, %v272
    %v275 = vmul.f32 %v273, 0.2
    %v276 = vmul.f32 %v274, 0.2
    %v277 = vmax.f32 %v273, %v275
    %v278 = vmax.f32 %v274, %v276
    %v279 = vadd.f32 %v277, %v59
    %v280 = vadd.f32 %v278, %v60
    %v281 = vsel %vm143, %v279, -inf
    %282 = vmax.xlane.f32.xlu0 %v281
    %v283 = vpop.xlane.xlu0 %282
    %v284 = vsel %vm143, %v280, -inf
    %285 = vmax.xlane.f32.xlu0 %v284
    %v286 = vpop.xlane.xlu0 %285
    %v287 = vsub.f32 %v279, %v283
    %v288 = vsub.f32 %v280, %v286
    %v289 = vmul.f32 %v287, 1.442695
    %v290 = vpow.pop %v289
    %v291 = vmul.f32 %v288, 1.442695
    %v292 = vpow.pop %v291
    %v293 = vsel %vm143, %v290, 0.0
    %294 = vadd.xlane.f32.xlu0 %v293
    %v295 = vpop.xlane.xlu0 %294
    %v296 = vsel %vm143, %v292, 0.0
    %297 = vadd.xlane.f32.xlu0 %v296
    %v298 = vpop.xlane.xlu0 %297
    %v299 = vrcp.pop %v295
    %v300 = vrcp.pop %v298
    %v301 = vmul.f32 %v290, %v299
    %v302 = vmul.f32 %v292, %v300
    %v304 = vperm.slane %v205, 0
    %v307 = vsel %vm143, %v301, 0
    %v310 = vsel %vm143, %v302, 0
    %312 = vmatpush.msra.mxu0 0.0
    %313 = vmatpush.msra.mxu0 0.0
    %314 = vmatpush.msra.mxu0 0.0
    %315 = vmatpush.msra.mxu0 0.0
    %316 = vmatpush.msra.mxu0 0.0
    %317 = vmatpush.msra.mxu0 0.0
    %318 = vmatpush.msra.mxu0 0.0
    %319 = vmatpush.msra.mxu0 0.0
    %320 = vmatpush.msra.mxu0 0.0
    %321 = vmatpush.msra.mxu0 0.0
    %322 = vmatpush.msra.mxu0 0.0
    %323 = vmatpush.msra.mxu0 0.0
    %324 = vmatpush.msra.mxu0 0.0
    %325 = vmatpush.msra.mxu0 0.0
    %326 = vmatpush.msra.mxu0 %v233
    %327 = vmatpush.msra.mxu0 %v230
    %328 = vmatmul.f32.gmra.mxu0 %v307
    %v329 = vpop.f32.mrf.mxu0
    %v330 = vadd.f32 %v304, %v329
    %331 = vmatmul.f32.gmra.mxu0 %v310
    %v332 = vpop.f32.mrf.mxu0
    %v333 = vadd.f32 %v304, %v332
    %334 = vdwg.mxu0
    %v336 = vsel %vm96, %v330, 0
    %v339 = vsel %vm96, %v333, 0
    %341 = vmatpush.msra.mxu0 0.0
    %342 = vmatpush.msra.mxu0 0.0
    %343 = vmatpush.msra.mxu0 0.0
    %344 = vmatpush.msra.mxu0 0.0
    %345 = vmatpush.msra.mxu0 0.0
    %346 = vmatpush.msra.mxu0 0.0
    %347 = vmatpush.msra.mxu0 0.0
    %348 = vmatpush.msra.mxu0 0.0
    %349 = vmatpush.msra.mxu0 0.0
    %350 = vmatpush.msra.mxu0 0.0
    %351 = vmatpush.msra.mxu0 0.0
    %352 = vmatpush.msra.mxu0 0.0
    %353 = vmatpush.msra.mxu0 %v203
    %354 = vmatpush.msra.mxu0 %v202
    %355 = vmatpush.msra.mxu0 %v201
    %356 = vmatpush.msra.mxu0 %v200
    %357 = vmatmul.f32.gmra.mxu0 %v336
    %v358 = vpop.f32.mrf.mxu0
    %v359 = vadd.f32 0.0, %v358
    %360 = vmatmul.f32.gmra.mxu0 %v339
    %v361 = vpop.f32.mrf.mxu0
    %v362 = vadd.f32 0.0, %v361
    %363 = vdwg.mxu0
    %v365 = vsel %vm96, %v359, 0
    %v368 = vsel %vm96, %v362, 0
    %370 = vmatpush.xpose.msra.mxu0 0.0
    %371 = vmatpush.xpose.msra.mxu0 0.0
    %372 = vmatpush.xpose.msra.mxu0 0.0
    %373 = vmatpush.xpose.msra.mxu0 0.0
    %374 = vmatpush.xpose.msra.mxu0 0.0
    %375 = vmatpush.xpose.msra.mxu0 0.0
    %376 = vmatpush.xpose.msra.mxu0 0.0
    %377 = vmatpush.xpose.msra.mxu0 0.0
    %378 = vmatpush.xpose.msra.mxu0 0.0
    %379 = vmatpush.xpose.msra.mxu0 0.0
    %380 = vmatpush.xpose.msra.mxu0 0.0
    %381 = vmatpush.xpose.msra.mxu0 0.0
    %382 = vmatpush.xpose.msra.mxu0 0.0
    %383 = vmatpush.xpose.msra.mxu0 0.0
    %384 = vmatpush.xpose.msra.mxu0 %v368
    %385 = vmatpush.xpose.msra.mxu0 %v365
    %386 = vmatmul.f32.gmra.mxu0 %v236
    %v387 = vpop.f32.mrf.mxu0
    %v388 = vadd.f32 0.0, %v387
    %389 = vdwg.mxu0
    %390 = vset.pattern.permute.xlu0 32
    %391 = vperm.xlu0 %390, %v359
    %v392 = vpop.permute.xlu0 %391
    %394 = vset.pattern.permute.xlu0 32
    %395 = vperm.xlu0 %394, %v362
    %v396 = vpop.permute.xlu0 %395
    %v398 = vperm.slane %v388, 0
    %v399 = vadd.f32 %v392, %v398
    %v400 = vadd.f32 %v396, %v398
    %v401 = vmul.f32 %v399, 0.2
    %v402 = vmul.f32 %v400, 0.2
    %v403 = vmax.f32 %v399, %v401
    %v404 = vmax.f32 %v400, %v402
    %v405 = vadd.f32 %v403, %v59
    %v406 = vadd.f32 %v404, %v60
    %v407 = vsel %vm143, %v405, -inf
    %408 = vmax.xlane.f32.xlu0 %v407
    %v409 = vpop.xlane.xlu0 %408
    %v410 = vsel %vm143, %v406, -inf
    %411 = vmax.xlane.f32.xlu0 %v410
    %v412 = vpop.xlane.xlu0 %411
    %v413 = vsub.f32 %v405, %v409
    %v414 = vsub.f32 %v406, %v412
    %v415 = vmul.f32 %v413, 1.442695
    %v416 = vpow.pop %v415
    %v417 = vmul.f32 %v414, 1.442695
    %v418 = vpow.pop %v417
    %v419 = vsel %vm143, %v416, 0.0
    %420 = vadd.xlane.f32.xlu0 %v419
    %v421 = vpop.xlane.xlu0 %420
    %v422 = vsel %vm143, %v418, 0.0
    %423 = vadd.xlane.f32.xlu0 %v422
    %v424 = vpop.xlane.xlu0 %423
    %v425 = vrcp.pop %v421
    %v426 = vrcp.pop %v424
    %v427 = vmul.f32 %v416, %v425
    %v428 = vmul.f32 %v418, %v426
    %v430 = vsel %vm143, %v427, 0
    %v433 = vsel %vm143, %v428, 0
    %435 = vmatpush.msra.mxu0 0.0
    %436 = vmatpush.msra.mxu0 0.0
    %437 = vmatpush.msra.mxu0 0.0
    %438 = vmatpush.msra.mxu0 0.0
    %439 = vmatpush.msra.mxu0 0.0
    %440 = vmatpush.msra.mxu0 0.0
    %441 = vmatpush.msra.mxu0 0.0
    %442 = vmatpush.msra.mxu0 0.0
    %443 = vmatpush.msra.mxu0 0.0
    %444 = vmatpush.msra.mxu0 0.0
    %445 = vmatpush.msra.mxu0 0.0
    %446 = vmatpush.msra.mxu0 0.0
    %447 = vmatpush.msra.mxu0 0.0
    %448 = vmatpush.msra.mxu0 0.0
    %449 = vmatpush.msra.mxu0 %v362
    %450 = vmatpush.msra.mxu0 %v359
    %451 = vmatmul.f32.gmra.mxu0 %v430
    %v452 = vpop.f32.mrf.mxu0
    %v453 = vadd.f32 %v304, %v452
    %454 = vmatmul.f32.gmra.mxu0 %v433
    %v455 = vpop.f32.mrf.mxu0
    %v456 = vadd.f32 %v304, %v455
    %457 = vdwg.mxu0
    %v459 = vsel %vm96, %v453, 0
    %v462 = vsel %vm96, %v456, 0
    %464 = vmatpush.msra.mxu0 0.0
    %465 = vmatpush.msra.mxu0 0.0
    %466 = vmatpush.msra.mxu0 0.0
    %467 = vmatpush.msra.mxu0 0.0
    %468 = vmatpush.msra.mxu0 0.0
    %469 = vmatpush.msra.mxu0 0.0
    %470 = vmatpush.msra.mxu0 0.0
    %471 = vmatpush.msra.mxu0 0.0
    %472 = vmatpush.msra.mxu0 0.0
    %473 = vmatpush.msra.mxu0 0.0
    %474 = vmatpush.msra.mxu0 0.0
    %475 = vmatpush.msra.mxu0 0.0
    %476 = vmatpush.msra.mxu0 %v203
    %477 = vmatpush.msra.mxu0 %v202
    %478 = vmatpush.msra.mxu0 %v201
    %479 = vmatpush.msra.mxu0 %v200
    %480 = vmatmul.f32.gmra.mxu0 %v459
    %v481 = vpop.f32.mrf.mxu0
    %v482 = vadd.f32 0.0, %v481
    %483 = vmatmul.f32.gmra.mxu0 %v462
    %v484 = vpop.f32.mrf.mxu0
    %v485 = vadd.f32 0.0, %v484
    %486 = vdwg.mxu0
    %v488 = vsel %vm96, %v482, 0
    %v491 = vsel %vm96, %v485, 0
    %493 = vmatpush.xpose.msra.mxu0 0.0
    %494 = vmatpush.xpose.msra.mxu0 0.0
    %495 = vmatpush.xpose.msra.mxu0 0.0
    %496 = vmatpush.xpose.msra.mxu0 0.0
    %497 = vmatpush.xpose.msra.mxu0 0.0
    %498 = vmatpush.xpose.msra.mxu0 0.0
    %499 = vmatpush.xpose.msra.mxu0 0.0
    %500 = vmatpush.xpose.msra.mxu0 0.0
    %501 = vmatpush.xpose.msra.mxu0 0.0
    %502 = vmatpush.xpose.msra.mxu0 0.0
    %503 = vmatpush.xpose.msra.mxu0 0.0
    %504 = vmatpush.xpose.msra.mxu0 0.0
    %505 = vmatpush.xpose.msra.mxu0 0.0
    %506 = vmatpush.xpose.msra.mxu0 0.0
    %507 = vmatpush.xpose.msra.mxu0 %v491
    %508 = vmatpush.xpose.msra.mxu0 %v488
    %509 = vmatmul.f32.gmra.mxu0 %v236
    %v510 = vpop.f32.mrf.mxu0
    %v511 = vadd.f32 0.0, %v510
    %512 = vdwg.mxu0
    %513 = vset.pattern.permute.xlu0 32
    %514 = vperm.xlu0 %513, %v482
    %v515 = vpop.permute.xlu0 %514
    %517 = vset.pattern.permute.xlu0 32
    %518 = vperm.xlu0 %517, %v485
    %v519 = vpop.permute.xlu0 %518
    %v521 = vperm.slane %v511, 0
    %v522 = vadd.f32 %v515, %v521
    %v523 = vadd.f32 %v519, %v521
    %v524 = vmul.f32 %v522, 0.2
    %v525 = vmul.f32 %v523, 0.2
    %v526 = vmax.f32 %v522, %v524
    %v527 = vmax.f32 %v523, %v525
    %v528 = vadd.f32 %v526, %v59
    %v529 = vadd.f32 %v527, %v60
    %v530 = vsel %vm143, %v528, -inf
    %531 = vmax.xlane.f32.xlu0 %v530
    %v532 = vpop.xlane.xlu0 %531
    %v533 = vsel %vm143, %v529, -inf
    %534 = vmax.xlane.f32.xlu0 %v533
    %v535 = vpop.xlane.xlu0 %534
    %v536 = vsub.f32 %v528, %v532
    %v537 = vsub.f32 %v529, %v535
    %v538 = vmul.f32 %v536, 1.442695
    %v539 = vpow.pop %v538
    %v540 = vmul.f32 %v537, 1.442695
    %v541 = vpow.pop %v540
    %v542 = vsel %vm143, %v539, 0.0
    %543 = vadd.xlane.f32.xlu0 %v542
    %v544 = vpop.xlane.xlu0 %543
    %v545 = vsel %vm143, %v541, 0.0
    %546 = vadd.xlane.f32.xlu0 %v545
    %v547 = vpop.xlane.xlu0 %546
    %v548 = vrcp.pop %v544
    %v549 = vrcp.pop %v547
    %v550 = vmul.f32 %v539, %v548
    %v551 = vmul.f32 %v541, %v549
    %v553 = vsel %vm143, %v550, 0
    %v556 = vsel %vm143, %v551, 0
    %558 = vmatpush.msra.mxu0 0.0
    %559 = vmatpush.msra.mxu0 0.0
    %560 = vmatpush.msra.mxu0 0.0
    %561 = vmatpush.msra.mxu0 0.0
    %562 = vmatpush.msra.mxu0 0.0
    %563 = vmatpush.msra.mxu0 0.0
    %564 = vmatpush.msra.mxu0 0.0
    %565 = vmatpush.msra.mxu0 0.0
    %566 = vmatpush.msra.mxu0 0.0
    %567 = vmatpush.msra.mxu0 0.0
    %568 = vmatpush.msra.mxu0 0.0
    %569 = vmatpush.msra.mxu0 0.0
    %570 = vmatpush.msra.mxu0 0.0
    %571 = vmatpush.msra.mxu0 0.0
    %572 = vmatpush.msra.mxu0 %v485
    %573 = vmatpush.msra.mxu0 %v482
    %574 = vmatmul.f32.gmra.mxu0 %v553
    %v575 = vpop.f32.mrf.mxu0
    %v576 = vadd.f32 %v304, %v575
    %577 = vmatmul.f32.gmra.mxu0 %v556
    %v578 = vpop.f32.mrf.mxu0
    %v579 = vadd.f32 %v304, %v578
    %580 = vdwg.mxu0
    %v581 = vld [vmem:[%s2] sm:$0x3]
    %v583 = vsel %vm143, %v581, 0
    %585 = vmatpush.msra.mxu0 0.0
    %586 = vmatpush.msra.mxu0 0.0
    %587 = vmatpush.msra.mxu0 0.0
    %588 = vmatpush.msra.mxu0 0.0
    %589 = vmatpush.msra.mxu0 0.0
    %590 = vmatpush.msra.mxu0 0.0
    %591 = vmatpush.msra.mxu0 0.0
    %592 = vmatpush.msra.mxu0 0.0
    %593 = vmatpush.msra.mxu0 0.0
    %594 = vmatpush.msra.mxu0 0.0
    %595 = vmatpush.msra.mxu0 0.0
    %596 = vmatpush.msra.mxu0 0.0
    %597 = vmatpush.msra.mxu0 0.0
    %598 = vmatpush.msra.mxu0 0.0
    %599 = vmatpush.msra.mxu0 %v579
    %600 = vmatpush.msra.mxu0 %v576
    %601 = vmatmul.f32.gmra.mxu0 %v583
    %v602 = vpop.f32.mrf.mxu0
    %v603 = vadd.f32 0.0, %v602
    %604 = vdwg.mxu0
    %v605 = vld [vmem:[%s3] sm:$0x3]
    %v606 = vld [vmem:[%s10] sm:$0xff]
    %v607 = vld [vmem:[%s10 + $0x8] sm:$0xf]
    %v608 = vld [vmem:[%s11] sm:$0x1]
    %v610 = vperm.slane %v608, 0
    %vm612 = vcmask 97280
    %v614 = vsel %vm612, %v605, 0
    %vm616 = vcmask 1043456
    %v618 = vsel %vm616, %v607, 0
    %620 = vmatpush.msra.mxu0 0.0
    %621 = vmatpush.msra.mxu0 0.0
    %622 = vmatpush.msra.mxu0 0.0
    %623 = vmatpush.msra.mxu0 0.0
    %624 = vmatpush.msra.mxu0 0.0
    %625 = vmatpush.msra.mxu0 0.0
    %626 = vmatpush.msra.mxu0 0.0
    %627 = vmatpush.msra.mxu0 0.0
    %628 = vmatpush.msra.mxu0 0.0
    %629 = vmatpush.msra.mxu0 0.0
    %630 = vmatpush.msra.mxu0 0.0
    %631 = vmatpush.msra.mxu0 0.0
    %632 = vmatpush.msra.mxu0 0.0
    %633 = vmatpush.msra.mxu0 0.0
    %634 = vmatpush.msra.mxu0 %v618
    %635 = vmatpush.msra.mxu0 %v606
    %636 = vmatmul.f32.gmra.mxu0 %v614
    %v637 = vpop.f32.mrf.mxu0
    %v638 = vadd.f32 %v610, %v637
    %639 = vdwg.mxu0
    %v640 = vmax.f32 %v638, 0.0
    %v641 = vld [vmem:[%s12] sm:$0xff]
    %v642 = vld [vmem:[%s12 + $0x8] sm:$0xff]
    %v643 = vld [vmem:[%s12 + $0x10] sm:$0xff]
    %v644 = vld [vmem:[%s12 + $0x18] sm:$0xff]
    %v645 = vld [vmem:[%s13] sm:$0xff]
    %v646 = vld [vmem:[%s13 + $0x8] sm:$0xff]
    %v647 = vld [vmem:[%s13 + $0x10] sm:$0xff]
    %v648 = vld [vmem:[%s13 + $0x18] sm:$0xff]
    %v650 = vsel %vm96, %v640, 0
    %652 = vmatpush.msra.mxu0 0.0
    %653 = vmatpush.msra.mxu0 0.0
    %654 = vmatpush.msra.mxu0 0.0
    %655 = vmatpush.msra.mxu0 0.0
    %656 = vmatpush.msra.mxu0 0.0
    %657 = vmatpush.msra.mxu0 0.0
    %658 = vmatpush.msra.mxu0 0.0
    %659 = vmatpush.msra.mxu0 0.0
    %660 = vmatpush.msra.mxu0 0.0
    %661 = vmatpush.msra.mxu0 0.0
    %662 = vmatpush.msra.mxu0 0.0
    %663 = vmatpush.msra.mxu0 0.0
    %664 = vmatpush.msra.mxu0 %v648
    %665 = vmatpush.msra.mxu0 %v647
    %666 = vmatpush.msra.mxu0 %v646
    %667 = vmatpush.msra.mxu0 %v645
    %668 = vmatmul.f32.gmra.mxu0 %v650
    %v669 = vpop.f32.mrf.mxu0
    %v670 = vadd.f32 0.0, %v669
    %671 = vdwg.mxu0
    %v673 = vsel %vm96, %v603, 0
    %675 = vmatpush.msra.mxu0 0.0
    %676 = vmatpush.msra.mxu0 0.0
    %677 = vmatpush.msra.mxu0 0.0
    %678 = vmatpush.msra.mxu0 0.0
    %679 = vmatpush.msra.mxu0 0.0
    %680 = vmatpush.msra.mxu0 0.0
    %681 = vmatpush.msra.mxu0 0.0
    %682 = vmatpush.msra.mxu0 0.0
    %683 = vmatpush.msra.mxu0 0.0
    %684 = vmatpush.msra.mxu0 0.0
    %685 = vmatpush.msra.mxu0 0.0
    %686 = vmatpush.msra.mxu0 0.0
    %687 = vmatpush.msra.mxu0 %v644
    %688 = vmatpush.msra.mxu0 %v643
    %689 = vmatpush.msra.mxu0 %v642
    %690 = vmatpush.msra.mxu0 %v641
    %691 = vmatmul.f32.gmra.mxu0 %v673
    %v692 = vpop.f32.mrf.mxu0
    %v693 = vadd.f32 %v670, %v692
    %694 = vdwg.mxu0
    %v695 = vld [vmem:[%s14] sm:$0x1]
    %v697 = vperm.slane %v695, 0
    %v699 = vadd.f32 %v693, %v697
    %700 = vst [vmem:[#allocation2] sm:$0x3] %v699
    // Predicated region
    $region62: #{gnn_forward.1} parent=1 // pred_check
      _
    $region63: #{gnn_forward.1} parent=1 // pred_check_branch
      %702 = sbr.rel (0) target = $region65
    $region64: #{gnn_forward.1} parent=1 // pred_region
      %704 = vsyncadd [#allocation3], 0
      %s706 = sshll.u32 [#allocation2], 4
      %s707 = int_to_ptr.vmem [resolvable:$true] %s706
      %s708 = sshll.u32 %s15, 4
      %s709 = int_to_ptr.hbm [resolvable:$true] %s708
      %711 = dma.vmem_to_hbm [thread:$0]  %s707, 32, %s709, [#allocation3]
    $region65: #{gnn_forward.1} parent=1 // pred_fallthru
      _
    // Predicated region
    $region66: #{gnn_forward.1} parent=1 // pred_check
      _
    $region67: #{gnn_forward.1} parent=1 // pred_check_branch
      %713 = sbr.rel (0) target = $region69
    $region68: #{gnn_forward.1} parent=1 // pred_region
      %715 = dma.done [#allocation3], 32
    $region69: #{gnn_forward.1} parent=1 // pred_fallthru
      _
    %716 = vsyncpa [#allocation3], 1

</llo_original>
